<compile_context>
chip_gen: v7x
topology: tpu7x:2x2x1
jax: 0.10.0
libtpu: 0.0.40
codegen_flags: <defaults>
</compile_context>

<pallas_src>
import functools

import jax
import jax.numpy as jnp
from jax import lax
from jax.experimental import pallas as pl
from jax.experimental.pallas import tpu as pltpu

CONFIG = {
    "num_of_in_features": 8,
    "num_of_out_features": 1,
}
RND_MEAN = 0.0
RND_STD = 0.003


def _round_up(n, m):
    return ((n + m - 1) // m) * m


def _make_mlp_kernel(num_layers, lane_chunk, use_vpu_last, compute_dtype):
    """Fused MLP kernel on a (batch_tile, in_f) input block.

    refs = (x_ref, w0, b0, w1, b1, ..., o_ref).
      * layer-0 weight: (h0, in_f) compute_dtype; layer 0 is an NT dot_general that
        contracts the feature axis and emits (h0, chunk) -> transposed dataflow.
      * hidden weights: (out, in) compute_dtype (PyTorch layout), h = W @ h + b on MXU.
      * when use_vpu_last, the final weight is an (in_last, 1) f32 column so the last
        layer is a VPU multiply + sublane reduce (no M=1 MXU pass).
      * biases: (out, 1) f32.
    Output ref is (out_f, batch_tile): lane-dense stores.
    """

    def kernel(*refs):
        x_ref = refs[0]
        o_ref = refs[-1]
        param_refs = refs[1:-1]

        # Hoist all weight/bias loads (one VMEM load per grid step, not per chunk).
        ws = [param_refs[2 * i][...] for i in range(num_layers)]
        bs = [param_refs[2 * i + 1][...].astype(jnp.float32) for i in range(num_layers)]

        # Hoist lane broadcasts out of the chunk loop (JAX does not CSE broadcast_in_dim).
        bs_b = [jnp.broadcast_to(b, (b.shape[0], lane_chunk)) for b in bs]
        if use_vpu_last:
            w_last_b = jnp.broadcast_to(ws[-1].astype(jnp.float32),
                                        (ws[-1].shape[0], lane_chunk))

        batch_tile = x_ref.shape[0]
        nchunks = batch_tile // lane_chunk
        n_mxu = num_layers - 1 if use_vpu_last else num_layers

        # Inner loop over batch sub-chunks bounds vreg live ranges while the grid-level
        # batch tile stays large enough to amortize per-step overhead.
        @pl.loop(0, nchunks)
        def _(c):
            off = pl.multiple_of(c * lane_chunk, lane_chunk)
            xc = x_ref[pl.ds(off, lane_chunk), :].astype(compute_dtype)  # (chunk, in_f)

            # Layer 0: contract the feature axis of both operands (NT matmul). This
            # absorbs the batch/feature transpose into the MXU: output is (h0, chunk).
            z = lax.dot_general(ws[0], xc, (((1,), (1,)), ((), ())),
                                preferred_element_type=jnp.float32) + bs_b[0]

            for i in range(1, n_mxu):                      # remaining hidden layers
                h = jnp.maximum(z, 0.0).astype(compute_dtype)
                z = jnp.dot(ws[i], h, preferred_element_type=jnp.float32) + bs_b[i]

            if use_vpu_last:
                # Final Linear with out_features == 1: VPU multiply + XLU sublane reduce.
                h = jnp.maximum(z, 0.0)                     # keep f32 on the VPU path
                out = jnp.sum(w_last_b * h, axis=0, keepdims=True) + bs_b[-1]
            else:
                out = z                                     # last layer has no ReLU

            o_ref[:, pl.ds(off, lane_chunk)] = out.astype(o_ref.dtype)

    return kernel


def init_params(key, hidden, std=RND_STD):
    """Deterministic normal(mean=0, std) init, PyTorch-native (out, in) weights."""
    dims = [CONFIG["num_of_in_features"]] + list(hidden) + [CONFIG["num_of_out_features"]]
    params = []
    for i in range(len(dims) - 1):
        key, kw, kb = jax.random.split(key, 3)
        w = RND_MEAN + std * jax.random.normal(kw, (dims[i + 1], dims[i]), jnp.float32)
        b = RND_MEAN + std * jax.random.normal(kb, (dims[i + 1],), jnp.float32)
        params.append((w, b))
    return params


@functools.partial(jax.jit, static_argnames=("batch_tile", "lane_chunk", "compute_dtype"))
def neural_net_forward(x, params, *, batch_tile=16384, lane_chunk=512,
                       compute_dtype=jnp.bfloat16):
    """x: (B, num_of_in_features) float32 -> (B, num_of_out_features) float32."""
    B, in_f = x.shape
    num_layers = len(params)
    out_f = params[-1][0].shape[0]
    use_vpu_last = (out_f == 1) and num_layers > 1

    # --- Batch tile selection (sweep batch_tile 8K/16K/32K for large B) -------------
    tile = min(_round_up(batch_tile, 128), _round_up(B, 128))
    if B > 128:
        # Keep >=2 grid steps so the "parallel" batch axis can shard across the two
        # TensorCores on v7x (harmless on the single-TC v5e/v6e).
        tile = min(tile, _round_up(pl.cdiv(B, 2), 128))
    # x lives in VMEM as (tile, in_f) f32 with the lane dim padded to 128; cap the tile
    # so the two pipeline buffers stay <= ~16 MiB (fits every generation's scoped VMEM
    # once vmem_limit_bytes=32 MiB is set below).
    x_row_bytes = _round_up(max(in_f, 1), 128) * 4
    max_tile_vmem = (16 * 1024 * 1024) // (2 * x_row_bytes)
    tile = min(tile, max(_round_up(max_tile_vmem, 128) - 128, 128)
               if max_tile_vmem % 128 else _round_up(max_tile_vmem, 128))
    tile = max(tile, 128)

    chunk = min(_round_up(lane_chunk, 128), tile)
    if tile % chunk != 0:
        chunk = 128

    # --- Specs -----------------------------------------------------------------------
    # x in natural layout: no wrapper transpose/cast pass over HBM.
    in_specs = [pl.BlockSpec((tile, in_f), lambda i: (i, 0))]
    flat = []
    for li, (w, b) in enumerate(params):
        if use_vpu_last and li == num_layers - 1:
            w_arg = w.T.astype(jnp.float32)                 # (in_last, 1) column, VPU path
        else:
            w_arg = w.astype(compute_dtype)                 # (out, in) PyTorch layout, MXU path
        b_arg = b.astype(jnp.float32).reshape(-1, 1)        # (out, 1) broadcasts over lanes
        for t in (w_arg, b_arg):
            flat.append(t)
            # Constant index_map => fetched once, resident in VMEM across the grid.
            in_specs.append(pl.BlockSpec(t.shape, lambda i: (0, 0)))

    out_spec = pl.BlockSpec((out_f, tile), lambda i: (0, i))  # lane-dense output block
    grid = (pl.cdiv(B, tile),)

    # NOTE: when B % tile != 0 the last block computes on padded/garbage rows; this is
    # safe because nothing reduces over the batch axis (layer 0 contracts features only)
    # and Pallas masks the writeback of the out-of-range lanes.
    yt = pl.pallas_call(
        _make_mlp_kernel(num_layers, chunk, use_vpu_last, compute_dtype),
        out_shape=jax.ShapeDtypeStruct((out_f, B), jnp.float32),
        grid_spec=pltpu.PrefetchScalarGridSpec(
            num_scalar_prefetch=0,
            grid=grid,
            in_specs=in_specs,
            out_specs=out_spec,
        ),
        compiler_params=pltpu.CompilerParams(
            dimension_semantics=("parallel",),              # batch tiles shard across TCs on v7x
            vmem_limit_bytes=32 * 1024 * 1024,              # covers v5e's 16 MiB default
        ),
    )(x, *flat)
    # (1, B) -> (B, 1) is a contiguous reshape for XLA (effectively free).
    return yt.T


def reference_forward(x, params):
    """Pure-JAX f32 reference in PyTorch layout: y = x @ W.T + b, ReLU between layers."""
    h = x.astype(jnp.float32)
    n = len(params)
    for i, (w, b) in enumerate(params):
        z = jnp.dot(h, w.astype(jnp.float32).T,
                    preferred_element_type=jnp.float32) + b.astype(jnp.float32)[None, :]
        h = jnp.maximum(z, 0.0) if i < n - 1 else z
    return h


if __name__ == "__main__":
    key = jax.random.PRNGKey(0)
    k_x, k_p, k_p2, k_x2 = jax.random.split(key, 4)

    hidden = [32, 32]            # args.hidden
    batch = 512                  # small demo batch: 2 grid steps
    in_f = CONFIG["num_of_in_features"]

    x = jax.random.normal(k_x, (batch, in_f), jnp.float32)

    # 1) Spec-faithful init (std=0.003), default tiling.
    params = init_params(k_p, hidden, std=RND_STD)
    out = neural_net_forward(x, params)
    out = jax.block_until_ready(out)
    assert out.shape == (batch, CONFIG["num_of_out_features"])
    ref = reference_forward(x, params)
    assert jnp.allclose(out, ref, atol=1e-6, rtol=5e-2), "mismatch vs f32 reference (spec init)"

    # 2) Stronger numerical check with larger-magnitude params (outputs O(1)).
    params_big = init_params(k_p2, hidden, std=0.5)
    out_big = jax.block_until_ready(neural_net_forward(x, params_big))
    ref_big = reference_forward(x, params_big)
    assert jnp.allclose(out_big, ref_big, atol=1e-2, rtol=5e-2), "mismatch vs f32 reference (big init)"

    # 3) Ragged batch (B % tile != 0) + inner chunk loop with >1 iteration.
    x_ragged = jax.random.normal(k_x2, (300, in_f), jnp.float32)
    out_r = jax.block_until_ready(
        neural_net_forward(x_ragged, params_big, batch_tile=256, lane_chunk=128))
    ref_r = reference_forward(x_ragged, params_big)
    assert out_r.shape == (300, CONFIG["num_of_out_features"])
    assert jnp.allclose(out_r, ref_r, atol=1e-2, rtol=5e-2), "mismatch on ragged batch"

    print("KERNEL_OK")
</pallas_src>

<mosaic_0001>
module attributes {stable_mosaic.version = 11 : i64} {
  func.func @kernel(%arg0: i32, %arg1: memref<256x8xf32, #tpu.memory_space<vmem>>, %arg2: memref<32x8xbf16, #tpu.memory_space<vmem>>, %arg3: memref<32x1xf32, #tpu.memory_space<vmem>>, %arg4: memref<32x32xbf16, #tpu.memory_space<vmem>>, %arg5: memref<32x1xf32, #tpu.memory_space<vmem>>, %arg6: memref<32x1xf32, #tpu.memory_space<vmem>>, %arg7: memref<1x1xf32, #tpu.memory_space<vmem>>, %arg8: memref<1x256xf32, #tpu.memory_space<vmem>>) attributes {dimension_semantics = [#tpu.dimension_semantics<parallel>], iteration_bounds = array<i64: 2>, scalar_prefetch = 0 : i64, scratch_operands = 0 : i64, tpu.core_type = #tpu.core_type<tc>, window_params = [{transform_indices = @transform_0, window_bounds = array<i64: 256, 8>}, {pipeline_mode = #tpu.pipeline_mode<synchronous>, transform_indices = @transform_1, window_bounds = array<i64: 32, 8>}, {pipeline_mode = #tpu.pipeline_mode<synchronous>, transform_indices = @transform_2, window_bounds = array<i64: 32, 1>}, {pipeline_mode = #tpu.pipeline_mode<synchronous>, transform_indices = @transform_3, window_bounds = array<i64: 32, 32>}, {pipeline_mode = #tpu.pipeline_mode<synchronous>, transform_indices = @transform_4, window_bounds = array<i64: 32, 1>}, {pipeline_mode = #tpu.pipeline_mode<synchronous>, transform_indices = @transform_5, window_bounds = array<i64: 32, 1>}, {pipeline_mode = #tpu.pipeline_mode<synchronous>, transform_indices = @transform_6, window_bounds = array<i64: 1, 1>}, {transform_indices = @transform_7, window_bounds = array<i64: 1, 256>}]} {
    %c0 = arith.constant 0 : index
    %c0_0 = arith.constant 0 : index
    %0 = vector.load %arg2[%c0, %c0_0] : memref<32x8xbf16, #tpu.memory_space<vmem>>, vector<32x8xbf16>
    %c0_1 = arith.constant 0 : index
    %c0_2 = arith.constant 0 : index
    %1 = vector.load %arg4[%c0_1, %c0_2] : memref<32x32xbf16, #tpu.memory_space<vmem>>, vector<32x32xbf16>
    %c0_3 = arith.constant 0 : index
    %c0_4 = arith.constant 0 : index
    %2 = vector.load %arg6[%c0_3, %c0_4] : memref<32x1xf32, #tpu.memory_space<vmem>>, vector<32x1xf32>
    %c0_5 = arith.constant 0 : index
    %c0_6 = arith.constant 0 : index
    %3 = vector.load %arg3[%c0_5, %c0_6] : memref<32x1xf32, #tpu.memory_space<vmem>>, vector<32x1xf32>
    %c0_7 = arith.constant 0 : index
    %c0_8 = arith.constant 0 : index
    %4 = vector.load %arg5[%c0_7, %c0_8] : memref<32x1xf32, #tpu.memory_space<vmem>>, vector<32x1xf32>
    %c0_9 = arith.constant 0 : index
    %c0_10 = arith.constant 0 : index
    %5 = vector.load %arg7[%c0_9, %c0_10] : memref<1x1xf32, #tpu.memory_space<vmem>>, vector<1x1xf32>
    %6 = vector.shape_cast %3 : vector<32x1xf32> to vector<32x1xf32>
    %7 = vector.broadcast %6 : vector<32x1xf32> to vector<32x256xf32>
    %8 = vector.shape_cast %4 : vector<32x1xf32> to vector<32x1xf32>
    %9 = vector.broadcast %8 : vector<32x1xf32> to vector<32x256xf32>
    %10 = vector.shape_cast %5 : vector<1x1xf32> to vector<1x1xf32>
    %11 = vector.broadcast %10 : vector<1x1xf32> to vector<1x256xf32>
    %12 = vector.shape_cast %2 : vector<32x1xf32> to vector<32x1xf32>
    %13 = vector.broadcast %12 : vector<32x1xf32> to vector<32x256xf32>
    %c0_i32 = arith.constant 0 : i32
    %c1_i32 = arith.constant 1 : i32
    %14 = arith.muli %c0_i32, %c1_i32 : i32
    %c0_i32_11 = arith.constant 0 : i32
    %15 = arith.addi %c0_i32_11, %14 : i32
    %c256_i32 = arith.constant 256 : i32
    %16 = arith.muli %15, %c256_i32 : i32
    %17 = tpu.assume_multiple %16, 256 : i32
    %18 = arith.index_cast %17 : i32 to index
    %c0_12 = arith.constant 0 : index
    %19 = vector.load %arg1[%18, %c0_12] : memref<256x8xf32, #tpu.memory_space<vmem>>, vector<256x8xf32>
    %20 = arith.truncf %19 : vector<256x8xf32> to vector<256x8xbf16>
    %cst = arith.constant dense<0.000000e+00> : vector<32x256xf32>
    %21 = tpu.matmul %0, %20, %cst {dimension_numbers = #tpu.dot_dimension_numbers<[1], [1], [0], [0], [0, 0, 1, 0], [], []>} : vector<32x8xbf16>, vector<256x8xbf16>, vector<32x256xf32> -> vector<32x256xf32>
    %22 = arith.addf %21, %7 : vector<32x256xf32>
    %cst_13 = arith.constant 0.000000e+00 : f32
    %23 = vector.broadcast %cst_13 : f32 to vector<32x256xf32>
    %24 = arith.maximumf %22, %23 : vector<32x256xf32>
    %25 = arith.truncf %24 : vector<32x256xf32> to vector<32x256xbf16>
    %cst_14 = arith.constant dense<0.000000e+00> : vector<32x256xf32>
    %26 = tpu.matmul %1, %25, %cst_14 {dimension_numbers = #tpu.dot_dimension_numbers<[1], [0], [0], [1], [0, 0, 1, 1], [], []>} : vector<32x32xbf16>, vector<32x256xbf16>, vector<32x256xf32> -> vector<32x256xf32>
    %27 = arith.addf %26, %9 : vector<32x256xf32>
    %cst_15 = arith.constant 0.000000e+00 : f32
    %28 = vector.broadcast %cst_15 : f32 to vector<32x256xf32>
    %29 = arith.maximumf %27, %28 : vector<32x256xf32>
    %30 = arith.mulf %13, %29 : vector<32x256xf32>
    %cst_16 = arith.constant dense<0.000000e+00> : vector<256xf32>
    %31 = vector.multi_reduction <add>, %30, %cst_16 [0] : vector<32x256xf32> to vector<256xf32>
    %32 = vector.shape_cast %31 : vector<256xf32> to vector<1x256xf32>
    %33 = arith.addf %32, %11 : vector<1x256xf32>
    %c0_17 = arith.constant 0 : index
    %34 = arith.index_cast %17 : i32 to index
    %35 = vector.load %arg8[%c0_17, %34] : memref<1x256xf32, #tpu.memory_space<vmem>>, vector<1x256xf32>
    tpu.vector_store %arg8[%c0_17, %34], %33 {strides = array<i32>} : memref<1x256xf32, #tpu.memory_space<vmem>>, vector<1x256xf32>,
    %c1_i32_18 = arith.constant 1 : i32
    return
  }
  func.func @transform_0(%arg0: i32) -> (i32, i32) {
    %c0_i32 = arith.constant 0 : i32
    %c0_i32_0 = arith.constant 0 : i32
    return %arg0, %c0_i32 : i32, i32
  }
  func.func @transform_1(%arg0: i32) -> (i32, i32) {
    %c0_i32 = arith.constant 0 : i32
    %c0_i32_0 = arith.constant 0 : i32
    %c0_i32_1 = arith.constant 0 : i32
    return %c0_i32, %c0_i32_0 : i32, i32
  }
  func.func @transform_2(%arg0: i32) -> (i32, i32) {
    %c0_i32 = arith.constant 0 : i32
    %c0_i32_0 = arith.constant 0 : i32
    %c0_i32_1 = arith.constant 0 : i32
    return %c0_i32, %c0_i32_0 : i32, i32
  }
  func.func @transform_3(%arg0: i32) -> (i32, i32) {
    %c0_i32 = arith.constant 0 : i32
    %c0_i32_0 = arith.constant 0 : i32
    %c0_i32_1 = arith.constant 0 : i32
    return %c0_i32, %c0_i32_0 : i32, i32
  }
  func.func @transform_4(%arg0: i32) -> (i32, i32) {
    %c0_i32 = arith.constant 0 : i32
    %c0_i32_0 = arith.constant 0 : i32
    %c0_i32_1 = arith.constant 0 : i32
    return %c0_i32, %c0_i32_0 : i32, i32
  }
  func.func @transform_5(%arg0: i32) -> (i32, i32) {
    %c0_i32 = arith.constant 0 : i32
    %c0_i32_0 = arith.constant 0 : i32
    %c0_i32_1 = arith.constant 0 : i32
    return %c0_i32, %c0_i32_0 : i32, i32
  }
  func.func @transform_6(%arg0: i32) -> (i32, i32) {
    %c0_i32 = arith.constant 0 : i32
    %c0_i32_0 = arith.constant 0 : i32
    %c0_i32_1 = arith.constant 0 : i32
    return %c0_i32, %c0_i32_0 : i32, i32
  }
  func.func @transform_7(%arg0: i32) -> (i32, i32) {
    %c0_i32 = arith.constant 0 : i32
    %c0_i32_0 = arith.constant 0 : i32
    return %c0_i32, %arg0 : i32, i32
  }
}

</mosaic_0001>

<llo_original>
// kernel: neural_net_forward.1
$region0: #{neural_net_forward.1}
  #allocation0 [shape = 'u32[]', space=smem, size = 0x4, offset = 0x4, fixed_abs, tag = 'smem constant byte address 0x4 - core index']
  #allocation1 [shape = 'u32[144,128]{1,0:T(1,128)}', space=vmem, size = 0x12000, scoped, tag = 'internal scratch']
  #allocation2 [shape = 'f32[1,1]{1,0:T(1,128)S(1)}', space=vmem, size = 0x200, scoped, tag = 'scoped memory for neural_net_forward.1']
  %s0 = inlined_call_operand.vmem [shape: f32[512,8], index: 0, kind: input, shape index: {}]
  %s1 = inlined_call_operand.vmem [shape: bf16[32,8], index: 1, kind: input, shape index: {}]
  %s2 = inlined_call_operand.vmem [shape: f32[32,1], index: 2, kind: input, shape index: {}]
  %s3 = inlined_call_operand.vmem [shape: bf16[32,32], index: 3, kind: input, shape index: {}]
  %s4 = inlined_call_operand.vmem [shape: f32[32,1], index: 4, kind: input, shape index: {}]
  %s5 = inlined_call_operand.vmem [shape: f32[32,1], index: 5, kind: input, shape index: {}]
  %s6 = inlined_call_operand.<no memory space> [shape: f32[1,1], index: 6, kind: input, shape index: {}]
  %s7 = inlined_call_operand.hbm [shape: f32[1,512], index: 7, kind: output, shape index: {}]
  %s8 = sld [smem:[#allocation0]]
  $region61: #{neural_net_forward.1} parent=0
    _
  %s10 = ssub.s32 1, %s8
  %s11 = scalar_select 0, %s10, %s8
  %v12 = vstv %s6
  %13 = vst [vmem:[#allocation2] sm:$0x1] %v12
  $region1: #{neural_net_forward.1} parent=0
    #allocation3 [shape = 'u8[2048]{0}', space=vmem, size = 0x800, scoped, tag = 'output window, operand 0']
    #allocation4 [shape = 's32[2]{0}', space=sflag, size = 0x8, scoped, tag = 'scoped memory for neural_net_forward.1']
    %14 = vsyncpa [#allocation4], 0
    %s15 = scalar_lea.sflag [#allocation4], 1
    %16 = vsyncpa %s15, 0
    loop: start=0, step=1, limit=4
    $region2: #{neural_net_forward.1} parent=1 // loop_pre_header
      _
    $region3: #{neural_net_forward.1} parent=1 // loop_header
      %s18 = sphi 0, %s22
      %p19 = scmp.ge.s32.totalorder %s18, 4
      %s28 = sphi 0, %s30
      %s31 = sphi 0, %s28
      %s32 = sphi 0, %s31
      %s48 = sphi 0, %s32
      %s52 = sphi 0, %s52
      %s54 = sphi 0, %s52
      %s55 = sphi 0, %s54
      %s69 = sphi 0, %s55
      %s73 = sphi 0, %s73
      %s75 = sphi 0, %s73
      %s76 = sphi 0, %s75
      %s90 = sphi 0, %s76
      %s94 = sphi 0, %s94
      %s96 = sphi 0, %s94
      %s97 = sphi 0, %s96
      %s111 = sphi 0, %s97
      %s115 = sphi 0, %s115
      %s117 = sphi 0, %s115
      %s118 = sphi 0, %s117
      %s132 = sphi 0, %s118
      %s136 = sphi 0, %s136
      %s138 = sphi 0, %s136
      %s139 = sphi 0, %s138
      %s153 = sphi 0, %s139
      %s157 = sphi 0, %s157
      %s159 = sphi 0, %s157
      %s160 = sphi 0, %s159
      %s174 = sphi 0, %s160
      %s180 = sphi 0, %s182
      %s183 = sphi 0, %s180
      %s184 = sphi 0, %s183
      %s200 = sphi 0, %s184
    $region4: #{neural_net_forward.1} parent=1 // loop_header_branch
      %21 = sbr.rel (%p19) target = $region8
    $region5: #{neural_net_forward.1} parent=1 // loop_body
      %s23 = ssub.s32 %s18, 1
      %s24 = ssub.s32 %s18, 2
      %s25 = sadd.s32 %s18, 1
      %s26 = ssub.s32 %s18, %s25
      %p27 = scmp.eq.s32.totalorder %s26, 0
      %s29 = sadd.s32 %s28, 1
      %s30 = scalar_select %p27, %s28, %s29
      %p33 = pneg %p27
      %p34 = scmp.eq.s32.totalorder %s18, 1
      %p35 = por %p33, %p34
      %p36 = scmp.ne.s32.totalorder %s28, %s31
      %p37 = scmp.eq.s32.totalorder %s18, 0
      %p38 = por %p36, %p37
      %p39 = scmp.ne.s32.totalorder %s28, %s31
      %p40 = scmp.eq.s32.totalorder %s23, 1
      %p41 = por %p39, %p40
      %p42 = scmp.ne.s32.totalorder %s31, %s32
      %p43 = scmp.eq.s32.totalorder %s23, 0
      %p44 = por %p42, %p43
      %p45 = scmp.ne.s32.totalorder %s31, %s32
      %p46 = scmp.eq.s32.totalorder %s24, 1
      %p47 = por %p45, %p46
      %p49 = scmp.ne.s32.totalorder %s32, %s48
      %p50 = scmp.eq.s32.totalorder %s24, 0
      %p51 = por %p49, %p50
      %s53 = sadd.s32 %s52, 1
      %p56 = scmp.eq.s32.totalorder %s18, 1
      %p57 = scmp.ne.s32.totalorder %s52, %s54
      %p58 = scmp.eq.s32.totalorder %s18, 0
      %p59 = por %p57, %p58
      %p60 = scmp.ne.s32.totalorder %s52, %s54
      %p61 = scmp.eq.s32.totalorder %s23, 1
      %p62 = por %p60, %p61
      %p63 = scmp.ne.s32.totalorder %s54, %s55
      %p64 = scmp.eq.s32.totalorder %s23, 0
      %p65 = por %p63, %p64
      %p66 = scmp.ne.s32.totalorder %s54, %s55
      %p67 = scmp.eq.s32.totalorder %s24, 1
      %p68 = por %p66, %p67
      %p70 = scmp.ne.s32.totalorder %s55, %s69
      %p71 = scmp.eq.s32.totalorder %s24, 0
      %p72 = por %p70, %p71
      %s74 = sadd.s32 %s73, 1
      %p77 = scmp.eq.s32.totalorder %s18, 1
      %p78 = scmp.ne.s32.totalorder %s73, %s75
      %p79 = scmp.eq.s32.totalorder %s18, 0
      %p80 = por %p78, %p79
      %p81 = scmp.ne.s32.totalorder %s73, %s75
      %p82 = scmp.eq.s32.totalorder %s23, 1
      %p83 = por %p81, %p82
      %p84 = scmp.ne.s32.totalorder %s75, %s76
      %p85 = scmp.eq.s32.totalorder %s23, 0
      %p86 = por %p84, %p85
      %p87 = scmp.ne.s32.totalorder %s75, %s76
      %p88 = scmp.eq.s32.totalorder %s24, 1
      %p89 = por %p87, %p88
      %p91 = scmp.ne.s32.totalorder %s76, %s90
      %p92 = scmp.eq.s32.totalorder %s24, 0
      %p93 = por %p91, %p92
      %s95 = sadd.s32 %s94, 1
      %p98 = scmp.eq.s32.totalorder %s18, 1
      %p99 = scmp.ne.s32.totalorder %s94, %s96
      %p100 = scmp.eq.s32.totalorder %s18, 0
      %p101 = por %p99, %p100
      %p102 = scmp.ne.s32.totalorder %s94, %s96
      %p103 = scmp.eq.s32.totalorder %s23, 1
      %p104 = por %p102, %p103
      %p105 = scmp.ne.s32.totalorder %s96, %s97
      %p106 = scmp.eq.s32.totalorder %s23, 0
      %p107 = por %p105, %p106
      %p108 = scmp.ne.s32.totalorder %s96, %s97
      %p109 = scmp.eq.s32.totalorder %s24, 1
      %p110 = por %p108, %p109
      %p112 = scmp.ne.s32.totalorder %s97, %s111
      %p113 = scmp.eq.s32.totalorder %s24, 0
      %p114 = por %p112, %p113
      %s116 = sadd.s32 %s115, 1
      %p119 = scmp.eq.s32.totalorder %s18, 1
      %p120 = scmp.ne.s32.totalorder %s115, %s117
      %p121 = scmp.eq.s32.totalorder %s18, 0
      %p122 = por %p120, %p121
      %p123 = scmp.ne.s32.totalorder %s115, %s117
      %p124 = scmp.eq.s32.totalorder %s23, 1
      %p125 = por %p123, %p124
      %p126 = scmp.ne.s32.totalorder %s117, %s118
      %p127 = scmp.eq.s32.totalorder %s23, 0
      %p128 = por %p126, %p127
      %p129 = scmp.ne.s32.totalorder %s117, %s118
      %p130 = scmp.eq.s32.totalorder %s24, 1
      %p131 = por %p129, %p130
      %p133 = scmp.ne.s32.totalorder %s118, %s132
      %p134 = scmp.eq.s32.totalorder %s24, 0
      %p135 = por %p133, %p134
      %s137 = sadd.s32 %s136, 1
      %p140 = scmp.eq.s32.totalorder %s18, 1
      %p141 = scmp.ne.s32.totalorder %s136, %s138
      %p142 = scmp.eq.s32.totalorder %s18, 0
      %p143 = por %p141, %p142
      %p144 = scmp.ne.s32.totalorder %s136, %s138
      %p145 = scmp.eq.s32.totalorder %s23, 1
      %p146 = por %p144, %p145
      %p147 = scmp.ne.s32.totalorder %s138, %s139
      %p148 = scmp.eq.s32.totalorder %s23, 0
      %p149 = por %p147, %p148
      %p150 = scmp.ne.s32.totalorder %s138, %s139
      %p151 = scmp.eq.s32.totalorder %s24, 1
      %p152 = por %p150, %p151
      %p154 = scmp.ne.s32.totalorder %s139, %s153
      %p155 = scmp.eq.s32.totalorder %s24, 0
      %p156 = por %p154, %p155
      %s158 = sadd.s32 %s157, 1
      %p161 = scmp.eq.s32.totalorder %s18, 1
      %p162 = scmp.ne.s32.totalorder %s157, %s159
      %p163 = scmp.eq.s32.totalorder %s18, 0
      %p164 = por %p162, %p163
      %p165 = scmp.ne.s32.totalorder %s157, %s159
      %p166 = scmp.eq.s32.totalorder %s23, 1
      %p167 = por %p165, %p166
      %p168 = scmp.ne.s32.totalorder %s159, %s160
      %p169 = scmp.eq.s32.totalorder %s23, 0
      %p170 = por %p168, %p169
      %p171 = scmp.ne.s32.totalorder %s159, %s160
      %p172 = scmp.eq.s32.totalorder %s24, 1
      %p173 = por %p171, %p172
      %p175 = scmp.ne.s32.totalorder %s160, %s174
      %p176 = scmp.eq.s32.totalorder %s24, 0
      %p177 = por %p175, %p176
      %s178 = ssub.s32 %s18, %s25
      %p179 = scmp.eq.s32.totalorder %s178, 0
      %s181 = sadd.s32 %s180, 1
      %s182 = scalar_select %p179, %s180, %s181
      %p185 = pneg %p179
      %p186 = scmp.eq.s32.totalorder %s18, 1
      %p187 = por %p185, %p186
      %p188 = scmp.ne.s32.totalorder %s180, %s183
      %p189 = scmp.eq.s32.totalorder %s18, 0
      %p190 = por %p188, %p189
      %p191 = scmp.ne.s32.totalorder %s180, %s183
      %p192 = scmp.eq.s32.totalorder %s23, 1
      %p193 = por %p191, %p192
      %p194 = scmp.ne.s32.totalorder %s183, %s184
      %p195 = scmp.eq.s32.totalorder %s23, 0
      %p196 = por %p194, %p195
      %p197 = scmp.ne.s32.totalorder %s183, %s184
      %p198 = scmp.eq.s32.totalorder %s24, 1
      %p199 = por %p197, %p198
      %p201 = scmp.ne.s32.totalorder %s184, %s200
      %p202 = scmp.eq.s32.totalorder %s24, 0
      %p203 = por %p201, %p202
      %p204 = scmp.le.s32.totalorder 1, %s18
      %p205 = scmp.lt.s32.totalorder %s18, 3
      %p206 = pnand %p204, %p205
      %p207 = pneg %p206
      // Predicated region
      $region9: #{neural_net_forward.1} parent=5 // pred_check
        _
      $region10: #{neural_net_forward.1} parent=5 // pred_check_branch
        %209 = sbr.rel (%p206) target = $region12
      $region11: #{neural_net_forward.1} parent=5 // pred_region
        %s210 = ssub.s32 %s18, 1
        // Predicated region
        $region13: #{neural_net_forward.1} parent=11 // pred_check
          %p211 = pneg %p65
        $region14: #{neural_net_forward.1} parent=11 // pred_check_branch
          %213 = sbr.rel (%p211) target = $region16
        $region15: #{neural_net_forward.1} parent=11 // pred_region
          _
        $region16: #{neural_net_forward.1} parent=11 // pred_fallthru
          _
        // Predicated region
        $region17: #{neural_net_forward.1} parent=11 // pred_check
          %p214 = pneg %p86
        $region18: #{neural_net_forward.1} parent=11 // pred_check_branch
          %216 = sbr.rel (%p214) target = $region20
        $region19: #{neural_net_forward.1} parent=11 // pred_region
          _
        $region20: #{neural_net_forward.1} parent=11 // pred_fallthru
          _
        // Predicated region
        $region21: #{neural_net_forward.1} parent=11 // pred_check
          %p217 = pneg %p107
        $region22: #{neural_net_forward.1} parent=11 // pred_check_branch
          %219 = sbr.rel (%p217) target = $region24
        $region23: #{neural_net_forward.1} parent=11 // pred_region
          _
        $region24: #{neural_net_forward.1} parent=11 // pred_fallthru
          _
        // Predicated region
        $region25: #{neural_net_forward.1} parent=11 // pred_check
          %p220 = pneg %p128
        $region26: #{neural_net_forward.1} parent=11 // pred_check_branch
          %222 = sbr.rel (%p220) target = $region28
        $region27: #{neural_net_forward.1} parent=11 // pred_region
          _
        $region28: #{neural_net_forward.1} parent=11 // pred_fallthru
          _
        // Predicated region
        $region29: #{neural_net_forward.1} parent=11 // pred_check
          %p223 = pneg %p149
        $region30: #{neural_net_forward.1} parent=11 // pred_check_branch
          %225 = sbr.rel (%p223) target = $region32
        $region31: #{neural_net_forward.1} parent=11 // pred_region
          _
        $region32: #{neural_net_forward.1} parent=11 // pred_fallthru
          _
        // Predicated region
        $region33: #{neural_net_forward.1} parent=11 // pred_check
          %p226 = pneg %p170
        $region34: #{neural_net_forward.1} parent=11 // pred_check_branch
          %228 = sbr.rel (%p226) target = $region36
        $region35: #{neural_net_forward.1} parent=11 // pred_region
          _
        $region36: #{neural_net_forward.1} parent=11 // pred_fallthru
          _
      $region12: #{neural_net_forward.1} parent=5 // pred_fallthru
        _
      %p229 = scmp.lt.s32.totalorder %s18, 2
      // Predicated region
      $region37: #{neural_net_forward.1} parent=5 // pred_check
        %p230 = pneg %p229
      $region38: #{neural_net_forward.1} parent=5 // pred_check_branch
        %232 = sbr.rel (%p230) target = $region40
      $region39: #{neural_net_forward.1} parent=5 // pred_region
        // Predicated region
        $region41: #{neural_net_forward.1} parent=39 // pred_check
          %p233 = pneg %p38
        $region42: #{neural_net_forward.1} parent=39 // pred_check_branch
          %235 = sbr.rel (%p233) target = $region44
        $region43: #{neural_net_forward.1} parent=39 // pred_region
          %s236 = smul.u32 32, %s18
          %p237 = scmp.lt.s32.totalorder %s236, 63
          %s238 = scalar_select %p237, %s236, 63
          %s239 = smul.addr %s238, 8
          %s240 = scalar_lea.vmem %s0, %s239
          %s241 = smul.u32 32, %s18
        $region44: #{neural_net_forward.1} parent=39 // pred_fallthru
          _
      $region40: #{neural_net_forward.1} parent=5 // pred_fallthru
        _
      %p242 = scmp.le.s32.totalorder 1, %s18
      %p243 = scmp.lt.s32.totalorder %s18, 3
      %p244 = pnand %p242, %p243
      %p245 = pneg %p244
      // Predicated region
      $region45: #{neural_net_forward.1} parent=5 // pred_check
        _
      $region46: #{neural_net_forward.1} parent=5 // pred_check_branch
        %247 = sbr.rel (%p244) target = $region48
      $region47: #{neural_net_forward.1} parent=5 // pred_region
        %s248 = ssub.s32 %s18, 1
        %s249 = smul.u32 32, %s23
        %p250 = scmp.lt.s32.totalorder %s249, 63
        %s251 = scalar_select %p250, %s249, 63
        %s252 = smul.addr %s251, 8
        %s253 = scalar_lea.vmem %s0, %s252
        %p254 = pneg %p44
        %p255 = pneg %p41
        %p256 = pneg %p65
        %p257 = pneg %p62
        %p258 = pneg %p86
        %p259 = pneg %p83
        %p260 = pneg %p107
        %p261 = pneg %p104
        %p262 = pneg %p128
        %p263 = pneg %p125
        %p264 = pneg %p149
        %p265 = pneg %p146
        %p266 = pneg %p170
        %p267 = pneg %p167
        %p268 = pneg %p196
        %p269 = pneg %p193
        %s270 = sand.u32 %s183, 1
        %s271 = scalar_lea.sflag [#allocation4], %s270
        %s272 = sand.u32 %s183, 1
        %s273 = smul.addr %s272, 2
        %s274 = scalar_lea.vmem [#allocation3], %s273
        %s275 = smul.u32 32, %s23
        %p276 = scmp.lt.s32.totalorder %s275, 63
        %s277 = scalar_select %p276, %s275, 63
        %s278 = smul.addr %s277, 8
        %s279 = scalar_lea.vmem %s0, %s278
        %s280 = smul.u32 32, %s23
        %s281 = smul.u32 2, %s23
        %v283 = vld [vmem:[%s1] sm:$0xf]
        %v284 = vld [vmem:[%s1 + $0x4] sm:$0xf]
        %v285 = vld [vmem:[%s1 + $0x8] sm:$0xf]
        %v286 = vld [vmem:[%s1 + $0xc] sm:$0xf]
        %v287 = vld [vmem:[%s3] sm:$0xf]
        %v288 = vld [vmem:[%s3 + $0x4] sm:$0xf]
        %v289 = vld [vmem:[%s3 + $0x8] sm:$0xf]
        %v290 = vld [vmem:[%s3 + $0xc] sm:$0xf]
        %v291 = vld [vmem:[%s5] sm:$0xff]
        %v292 = vld [vmem:[%s5 + $0x8] sm:$0xff]
        %v293 = vld [vmem:[%s5 + $0x10] sm:$0xff]
        %v294 = vld [vmem:[%s5 + $0x18] sm:$0xff]
        %v295 = vld [vmem:[%s2] sm:$0xff]
        %v296 = vld [vmem:[%s2 + $0x8] sm:$0xff]
        %v297 = vld [vmem:[%s2 + $0x10] sm:$0xff]
        %v298 = vld [vmem:[%s2 + $0x18] sm:$0xff]
        %v299 = vld [vmem:[%s4] sm:$0xff]
        %v300 = vld [vmem:[%s4 + $0x8] sm:$0xff]
        %v301 = vld [vmem:[%s4 + $0x10] sm:$0xff]
        %v302 = vld [vmem:[%s4 + $0x18] sm:$0xff]
        %v303 = vld [vmem:[#allocation2] sm:$0x1]
        %305 = vset.pattern.permute.xlu0 0
        %306 = vperm.xlu0 %305, %v295
        %v307 = vpop.permute.xlu0 %306
        %310 = vset.pattern.permute.xlu0 0
        %311 = vperm.xlu0 %310, %v296
        %v312 = vpop.permute.xlu0 %311
        %315 = vset.pattern.permute.xlu0 0
        %316 = vperm.xlu0 %315, %v297
        %v317 = vpop.permute.xlu0 %316
        %320 = vset.pattern.permute.xlu0 0
        %321 = vperm.xlu0 %320, %v298
        %v322 = vpop.permute.xlu0 %321
        %325 = vset.pattern.permute.xlu0 0
        %326 = vperm.xlu0 %325, %v299
        %v327 = vpop.permute.xlu0 %326
        %330 = vset.pattern.permute.xlu0 0
        %331 = vperm.xlu0 %330, %v300
        %v332 = vpop.permute.xlu0 %331
        %335 = vset.pattern.permute.xlu0 0
        %336 = vperm.xlu0 %335, %v301
        %v337 = vpop.permute.xlu0 %336
        %340 = vset.pattern.permute.xlu0 0
        %341 = vperm.xlu0 %340, %v302
        %v342 = vpop.permute.xlu0 %341
        %345 = vset.pattern.permute.xlu0 0
        %346 = vperm.xlu0 %345, %v303
        %v347 = vpop.permute.xlu0 %346
        %v349 = vlaneseq
        %v350 = vshrl.u32 %v349, 7
        %v351 = vsub.s32 0, %v350
        %v352 = vrot.slane %v347, %v351
        %354 = vset.pattern.permute.xlu0 0
        %355 = vperm.xlu0 %354, %v291
        %v356 = vpop.permute.xlu0 %355
        %359 = vset.pattern.permute.xlu0 0
        %360 = vperm.xlu0 %359, %v292
        %v361 = vpop.permute.xlu0 %360
        %364 = vset.pattern.permute.xlu0 0
        %365 = vperm.xlu0 %364, %v293
        %v366 = vpop.permute.xlu0 %365
        %369 = vset.pattern.permute.xlu0 0
        %370 = vperm.xlu0 %369, %v294
        %v371 = vpop.permute.xlu0 %370
        %v373 = vld [vmem:[%s279] sm:$0xff]
        %v374 = vld [vmem:[%s279 + $0x8] sm:$0xff]
        %v375 = vld [vmem:[%s279 + $0x10] sm:$0xff]
        %v376 = vld [vmem:[%s279 + $0x18] sm:$0xff]
        %v377 = vld [vmem:[%s279 + $0x20] sm:$0xff]
        %v378 = vld [vmem:[%s279 + $0x28] sm:$0xff]
        %v379 = vld [vmem:[%s279 + $0x30] sm:$0xff]
        %v380 = vld [vmem:[%s279 + $0x38] sm:$0xff]
        %v381 = vld [vmem:[%s279 + $0x40] sm:$0xff]
        %v382 = vld [vmem:[%s279 + $0x48] sm:$0xff]
        %v383 = vld [vmem:[%s279 + $0x50] sm:$0xff]
        %v384 = vld [vmem:[%s279 + $0x58] sm:$0xff]
        %v385 = vld [vmem:[%s279 + $0x60] sm:$0xff]
        %v386 = vld [vmem:[%s279 + $0x68] sm:$0xff]
        %v387 = vld [vmem:[%s279 + $0x70] sm:$0xff]
        %v388 = vld [vmem:[%s279 + $0x78] sm:$0xff]
        %v389 = vld [vmem:[%s279 + $0x80] sm:$0xff]
        %v390 = vld [vmem:[%s279 + $0x88] sm:$0xff]
        %v391 = vld [vmem:[%s279 + $0x90] sm:$0xff]
        %v392 = vld [vmem:[%s279 + $0x98] sm:$0xff]
        %v393 = vld [vmem:[%s279 + $0xa0] sm:$0xff]
        %v394 = vld [vmem:[%s279 + $0xa8] sm:$0xff]
        %v395 = vld [vmem:[%s279 + $0xb0] sm:$0xff]
        %v396 = vld [vmem:[%s279 + $0xb8] sm:$0xff]
        %v397 = vld [vmem:[%s279 + $0xc0] sm:$0xff]
        %v398 = vld [vmem:[%s279 + $0xc8] sm:$0xff]
        %v399 = vld [vmem:[%s279 + $0xd0] sm:$0xff]
        %v400 = vld [vmem:[%s279 + $0xd8] sm:$0xff]
        %v401 = vld [vmem:[%s279 + $0xe0] sm:$0xff]
        %v402 = vld [vmem:[%s279 + $0xe8] sm:$0xff]
        %v403 = vld [vmem:[%s279 + $0xf0] sm:$0xff]
        %v404 = vld [vmem:[%s279 + $0xf8] sm:$0xff]
        %v405 = vpack.c.bf16 %v374, %v373
        %v406 = vpack.c.bf16 %v376, %v375
        %v407 = vpack.c.bf16 %v378, %v377
        %v408 = vpack.c.bf16 %v380, %v379
        %v409 = vpack.c.bf16 %v382, %v381
        %v410 = vpack.c.bf16 %v384, %v383
        %v411 = vpack.c.bf16 %v386, %v385
        %v412 = vpack.c.bf16 %v388, %v387
        %v413 = vpack.c.bf16 %v390, %v389
        %v414 = vpack.c.bf16 %v392, %v391
        %v415 = vpack.c.bf16 %v394, %v393
        %v416 = vpack.c.bf16 %v396, %v395
        %v417 = vpack.c.bf16 %v398, %v397
        %v418 = vpack.c.bf16 %v400, %v399
        %v419 = vpack.c.bf16 %v402, %v401
        %v420 = vpack.c.bf16 %v404, %v403
        %v425 = vunpack.c.l.b16 %v283
        %v426 = vunpack.c.l.b16 %v284
        %v427 = vunpack.c.l.b16 %v285
        %v428 = vunpack.c.l.b16 %v286
        %v429 = vpack.c.b16 %v426, %v425
        %v430 = vpack.c.b16 %v428, %v427
        %vm431 = vcmask 64512
        %v433 = vsel %vm431, %v429, 0
        %v436 = vsel %vm431, %v430, 0
        %v439 = vsel %vm431, %v405, 0
        %v442 = vsel %vm431, %v406, 0
        %v445 = vsel %vm431, %v407, 0
        %v448 = vsel %vm431, %v408, 0
        %v451 = vsel %vm431, %v409, 0
        %v454 = vsel %vm431, %v410, 0
        %v457 = vsel %vm431, %v411, 0
        %v460 = vsel %vm431, %v412, 0
        %v463 = vsel %vm431, %v413, 0
        %v466 = vsel %vm431, %v414, 0
        %v469 = vsel %vm431, %v415, 0
        %v472 = vsel %vm431, %v416, 0
        %v475 = vsel %vm431, %v417, 0
        %v478 = vsel %vm431, %v418, 0
        %v481 = vsel %vm431, %v419, 0
        %v484 = vsel %vm431, %v420, 0
        %486 = vmatprep.subr.bf16.mxu0 0
        %487 = vmatpush1.bf16.xpose.msra.mxu0 %v439
        %488 = vmatprep.subr.bf16.mxu0 0
        %489 = vmatpush1.bf16.xpose.msra.mxu0 %v442
        %490 = vmatprep.subr.bf16.mxu0 0
        %491 = vmatpush1.bf16.xpose.msra.mxu0 %v445
        %492 = vmatprep.subr.bf16.mxu0 0
        %493 = vmatpush1.bf16.xpose.msra.mxu0 %v448
        %494 = vmatprep.subr.bf16.mxu0 0
        %495 = vmatpush1.bf16.xpose.msra.mxu0 %v451
        %496 = vmatprep.subr.bf16.mxu0 0
        %497 = vmatpush1.bf16.xpose.msra.mxu0 %v454
        %498 = vmatprep.subr.bf16.mxu0 0
        %499 = vmatpush1.bf16.xpose.msra.mxu0 %v457
        %500 = vmatprep.subr.bf16.mxu0 0
        %501 = vmatpush1.bf16.xpose.msra.mxu0 %v460
        %502 = vmatprep.subr.bf16.mxu0 0
        %503 = vmatpush1.bf16.xpose.msra.mxu0 %v463
        %504 = vmatprep.subr.bf16.mxu0 0
        %505 = vmatpush1.bf16.xpose.msra.mxu0 %v466
        %506 = vmatprep.subr.bf16.mxu0 0
        %507 = vmatpush1.bf16.xpose.msra.mxu0 %v469
        %508 = vmatprep.subr.bf16.mxu0 0
        %509 = vmatpush1.bf16.xpose.msra.mxu0 %v472
        %510 = vmatprep.subr.bf16.mxu0 0
        %511 = vmatpush1.bf16.xpose.msra.mxu0 %v475
        %512 = vmatprep.subr.bf16.mxu0 0
        %513 = vmatpush1.bf16.xpose.msra.mxu0 %v478
        %514 = vmatprep.subr.bf16.mxu0 0
        %515 = vmatpush1.bf16.xpose.msra.mxu0 %v481
        %516 = vmatprep.subr.bf16.mxu0 0
        %517 = vmatpush1.bf16.xpose.msra.mxu0 %v484
        %518 = vmatprep.mubr.bf16.mxu0 0
        %519 = vmatmul.mubr.bf16.gmra.mrb[0].mxu0 %v433
        %v520 = vpop.f32.mrb[0].mxu0
        %v521 = vadd.f32 %v307, %v520
        %v522 = vpop.f32.mrb[0].mxu0
        %v523 = vadd.f32 %v307, %v522
        %v524 = vpop.f32.mrb[0].mxu0
        %v525 = vadd.f32 %v312, %v524
        %v526 = vpop.f32.mrb[0].mxu0
        %v527 = vadd.f32 %v312, %v526
        %528 = vmatprep.mubr.bf16.mxu0 0
        %529 = vmatmul.mubr.bf16.gmra.mrb[0].mxu0 %v436
        %v530 = vpop.f32.mrb[0].mxu0
        %v531 = vadd.f32 %v317, %v530
        %v532 = vpop.f32.mrb[0].mxu0
        %v533 = vadd.f32 %v317, %v532
        %v534 = vpop.f32.mrb[0].mxu0
        %v535 = vadd.f32 %v322, %v534
        %v536 = vpop.f32.mrb[0].mxu0
        %v537 = vadd.f32 %v322, %v536
        %538 = vdwg.mxu0
        %v539 = vmax.f32 %v521, 0.0
        %v540 = vmax.f32 %v523, 0.0
        %v541 = vmax.f32 %v525, 0.0
        %v542 = vmax.f32 %v527, 0.0
        %v543 = vmax.f32 %v531, 0.0
        %v544 = vmax.f32 %v533, 0.0
        %v545 = vmax.f32 %v535, 0.0
        %v546 = vmax.f32 %v537, 0.0
        %v547 = vpack.c.bf16 %v541, %v539
        %v548 = vpack.c.bf16 %v542, %v540
        %v549 = vpack.c.bf16 %v545, %v543
        %v550 = vpack.c.bf16 %v546, %v544
        %v555 = vunpack.c.l.b16 %v287
        %v556 = vunpack.c.l.b16 %v288
        %v557 = vunpack.c.l.b16 %v289
        %v558 = vunpack.c.l.b16 %v290
        %v559 = vpack.c.b16 %v556, %v555
        %v560 = vpack.c.b16 %v558, %v557
        %vm561 = vcmask 261120
        %v563 = vsel %vm561, %v559, 0
        %v566 = vsel %vm561, %v560, 0
        %568 = vmatprep.subr.bf16.mxu0 %v548
        %569 = vmatpush1.bf16.msra.mxu0 %v547
        %570 = vmatprep.subr.bf16.mxu0 %v550
        %571 = vmatpush1.bf16.msra.mxu0 %v549
        %572 = vmatprep.subr.bf16.mxu0 0
        %573 = vmatpush1.bf16.msra.mxu0 0
        %574 = vmatprep.subr.bf16.mxu0 0
        %575 = vmatpush1.bf16.msra.mxu0 0
        %576 = vmatprep.subr.bf16.mxu0 0
        %577 = vmatpush1.bf16.msra.mxu0 0
        %578 = vmatprep.subr.bf16.mxu0 0
        %579 = vmatpush1.bf16.msra.mxu0 0
        %580 = vmatprep.subr.bf16.mxu0 0
        %581 = vmatpush1.bf16.msra.mxu0 0
        %582 = vmatprep.subr.bf16.mxu0 0
        %583 = vmatpush1.bf16.msra.mxu0 0
        %584 = vmatprep.subr.bf16.mxu0 0
        %585 = vmatpush1.bf16.msra.mxu0 0
        %586 = vmatprep.subr.bf16.mxu0 0
        %587 = vmatpush1.bf16.msra.mxu0 0
        %588 = vmatprep.subr.bf16.mxu0 0
        %589 = vmatpush1.bf16.msra.mxu0 0
        %590 = vmatprep.subr.bf16.mxu0 0
        %591 = vmatpush1.bf16.msra.mxu0 0
        %592 = vmatprep.subr.bf16.mxu0 0
        %593 = vmatpush1.bf16.msra.mxu0 0
        %594 = vmatprep.subr.bf16.mxu0 0
        %595 = vmatpush1.bf16.msra.mxu0 0
        %596 = vmatprep.subr.bf16.mxu0 0
        %597 = vmatpush1.bf16.msra.mxu0 0
        %598 = vmatprep.subr.bf16.mxu0 0
        %599 = vmatpush1.bf16.msra.mxu0 0
        %600 = vmatprep.mubr.bf16.mxu0 0
        %601 = vmatmul.mubr.bf16.gmra.mrb[0].mxu0 %v563
        %v602 = vpop.f32.mrb[0].mxu0
        %v603 = vadd.f32 %v327, %v602
        %v604 = vpop.f32.mrb[0].mxu0
        %v605 = vadd.f32 %v327, %v604
        %v606 = vpop.f32.mrb[0].mxu0
        %v607 = vadd.f32 %v332, %v606
        %v608 = vpop.f32.mrb[0].mxu0
        %v609 = vadd.f32 %v332, %v608
        %610 = vmatprep.mubr.bf16.mxu0 0
        %611 = vmatmul.mubr.bf16.gmra.mrb[0].mxu0 %v566
        %v612 = vpop.f32.mrb[0].mxu0
        %v613 = vadd.f32 %v337, %v612
        %v614 = vpop.f32.mrb[0].mxu0
        %v615 = vadd.f32 %v337, %v614
        %v616 = vpop.f32.mrb[0].mxu0
        %v617 = vadd.f32 %v342, %v616
        %v618 = vpop.f32.mrb[0].mxu0
        %v619 = vadd.f32 %v342, %v618
        %620 = vdwg.mxu0
        %v621 = vmax.f32 %v603, 0.0
        %v622 = vmax.f32 %v605, 0.0
        %v623 = vmax.f32 %v607, 0.0
        %v624 = vmax.f32 %v609, 0.0
        %v625 = vmax.f32 %v613, 0.0
        %v626 = vmax.f32 %v615, 0.0
        %v627 = vmax.f32 %v617, 0.0
        %v628 = vmax.f32 %v619, 0.0
        %v629 = vmul.f32 %v356, %v621
        %v630 = vmul.f32 %v356, %v622
        %v631 = vmul.f32 %v361, %v623
        %v632 = vmul.f32 %v361, %v624
        %v633 = vmul.f32 %v366, %v625
        %v634 = vmul.f32 %v366, %v626
        %v635 = vmul.f32 %v371, %v627
        %v636 = vmul.f32 %v371, %v628
        %v637 = vadd.f32 %v629, %v631
        %v638 = vadd.f32 %v637, %v633
        %v639 = vadd.f32 %v638, %v635
        %v640 = vrot.slane %v639, 4
        %v641 = vadd.f32 %v639, %v640
        %v642 = vrot.slane %v641, 2
        %v643 = vadd.f32 %v641, %v642
        %v644 = vrot.slane %v643, 1
        %v645 = vadd.f32 %v643, %v644
        %v646 = vadd.f32 %v630, %v632
        %v647 = vadd.f32 %v646, %v634
        %v648 = vadd.f32 %v647, %v636
        %v649 = vrot.slane %v648, 4
        %v650 = vadd.f32 %v648, %v649
        %v651 = vrot.slane %v650, 2
        %v652 = vadd.f32 %v650, %v651
        %v653 = vrot.slane %v652, 1
        %v654 = vadd.f32 %v652, %v653
        %v655 = vadd.f32 %v645, %v352
        %v656 = vadd.f32 %v654, %v352
        %v659 = vcombine.low %v655, %v656
        %v661 = vunpack.c.l.s4 1966171168
        %v662 = vunpack.c.0.s8 %v661
        %v663 = vlaneseq
        %v664 = vshrl.u32 %v663, 7
        %v665 = vsub.s32 %v662, %v664
        %v666 = vrot.slane %v659, %v665
        %v668 = vunpack.c.l.s4 1966171168
        %v669 = vunpack.c.0.s8 %v668
        %v670 = vlaneseq
        %v671 = vshrl.u32 %v670, 7
        %v672 = vsub.s32 %v669, %v671
        %v673 = vrot.slane %v666, %v672
        %v675 = vlaneseq
        %vm676 = vcmp.ge.s32.totalorder %v675, 0
        %vm677 = vcmp.lt.s32.totalorder %v675, 256
        %vm678 = vmand %vm676, %vm677
        %679 = vst.msk [vmem:[%s274] sm:$0x3] %vm678, %v673
        %s680 = sand.u32 %s183, 1
        %s681 = scalar_lea.sflag [#allocation4], %s680
        %s682 = sand.u32 %s183, 1
        %s683 = smul.addr %s682, 2
        %s684 = scalar_lea.vmem [#allocation3], %s683
        // Predicated region
        $region49: #{neural_net_forward.1} parent=47 // pred_check
          %p685 = pneg %p193
        $region50: #{neural_net_forward.1} parent=47 // pred_check_branch
          %687 = sbr.rel (%p685) target = $region52
        $region51: #{neural_net_forward.1} parent=47 // pred_region
          %s688 = smul.u32 2, %s23
          %s690 = ssub.s32 32, 32
          %691 = vsyncadd %s681, %s690
          %s692 = smul.addr %s688, 16
          %s693 = scalar_lea.hbm %s7, %s692
          %s695 = sshll.u32 %s684, 4
          %s696 = int_to_ptr.vmem [resolvable:$true] %s695
          %698 = dma.vmem_to_hbm [thread:$0]  %s696, 32, %s693, %s681
        $region52: #{neural_net_forward.1} parent=47 // pred_fallthru
          _
      $region48: #{neural_net_forward.1} parent=5 // pred_fallthru
        _
      %p699 = scmp.le.s32.totalorder 2, %s18
      // Predicated region
      $region53: #{neural_net_forward.1} parent=5 // pred_check
        %p700 = pneg %p699
      $region54: #{neural_net_forward.1} parent=5 // pred_check_branch
        %702 = sbr.rel (%p700) target = $region56
      $region55: #{neural_net_forward.1} parent=5 // pred_region
        %s703 = ssub.s32 %s18, 2
        // Predicated region
        $region57: #{neural_net_forward.1} parent=55 // pred_check
          %p704 = pneg %p199
        $region58: #{neural_net_forward.1} parent=55 // pred_check_branch
          %706 = sbr.rel (%p704) target = $region60
        $region59: #{neural_net_forward.1} parent=55 // pred_region
          %s707 = sand.u32 %s184, 1
          %s708 = scalar_lea.sflag [#allocation4], %s707
          %s709 = sand.u32 %s184, 1
          %s710 = smul.addr %s709, 2
          %s711 = scalar_lea.vmem [#allocation3], %s710
          %712 = dma.done %s708, 32
        $region60: #{neural_net_forward.1} parent=55 // pred_fallthru
          _
      $region56: #{neural_net_forward.1} parent=5 // pred_fallthru
        _
    $region6: #{neural_net_forward.1} parent=1 // loop_footer
      %s22 = sadd.s32 1, %s18
    $region7: #{neural_net_forward.1} parent=1 // loop_footer_branch
      %17 = sbr.rel target = $region3
    $region8: #{neural_net_forward.1} parent=1 // loop_exit
      _
    %713 = vsyncpa [#allocation4], 1
    %s714 = scalar_lea.sflag [#allocation4], 1
    %715 = vsyncpa %s714, 1

</llo_original>
